<compile_context>
chip_gen: v5e
topology: v5e:2x2
jax: 0.10.0
libtpu: 0.0.40
codegen_flags: <defaults>
</compile_context>

<pallas_src>
import jax
import jax.numpy as jnp
from jax.experimental import pallas as pl
from jax.experimental.pallas import tpu as pltpu

EPS = 1e-5
NEG_SLOPE = 0.01  # PyTorch nn.LeakyReLU default negative_slope


def _vmem_capacity_bytes(default=64 << 20):
    """Physical VMEM per TensorCore; falls back to the smallest (v7x) value."""
    try:
        return int(pltpu.get_tpu_info().vmem_capacity_bytes)
    except Exception:
        return default


def _bn_epilogue(y, p_ref, o_ref):
    """Training-mode BatchNorm1d on y (f32, (N, tile_n)); writes o_ref.

    Mean-shifted two-pass variance (numerically safer than E[y^2]-E[y]^2);
    the centered value d is reused for the final scale/shift store.
    """
    n = y.shape[0]
    inv_n = jnp.float32(1.0 / n)
    mean = jnp.sum(y, axis=0, keepdims=True) * inv_n            # (1, tile_n)
    d = y - mean
    var = jnp.sum(d * d, axis=0, keepdims=True) * inv_n
    inv_std = jax.lax.rsqrt(var + EPS)
    scale = p_ref[1:2, :] * inv_std                              # gamma * inv_std
    o_ref[...] = (d * scale + p_ref[2:3, :]).astype(o_ref.dtype)  # + beta


def _resident_kernel(x_ref, w_ref, p_ref, o_ref):
    # x_ref: full (N, n_in) bf16 resident in VMEM (single copy, no pipelining).
    # w_ref: (n_in, tile_n) bf16 tile. p_ref: (8, tile_n) f32, rows 0..2 are
    # bias / gamma / beta.
    y = jnp.dot(x_ref[...], w_ref[...], preferred_element_type=jnp.float32)
    y = y + p_ref[0:1, :]
    y = jnp.where(y >= 0.0, y, NEG_SLOPE * y)   # LeakyReLU(0.01)
    _bn_epilogue(y, p_ref, o_ref)


def _ktiled_kernel(x_ref, w_ref, p_ref, o_ref, acc_ref):
    # Grid = (feature tiles [parallel], K tiles [arbitrary, last]).
    k = pl.program_id(1)

    @pl.when(k == 0)
    def _():
        acc_ref[...] = jnp.zeros_like(acc_ref)

    acc_ref[...] += jnp.dot(x_ref[...], w_ref[...],
                            preferred_element_type=jnp.float32)

    @pl.when(k == pl.num_programs(1) - 1)
    def _():
        y = acc_ref[...] + p_ref[0:1, :]
        y = jnp.where(y >= 0.0, y, NEG_SLOPE * y)
        _bn_epilogue(y, p_ref, o_ref)


def prepare_params(w_t, b, gamma, beta, *, feed_dtype=jnp.bfloat16):
    """One-time parameter prep: pick tile_n, pad n_out, pack, cast.

    w_t: (n_in, n_out) f32 (pre-transposed nn.Linear weight);
    b/gamma/beta: (1, n_out) f32. Done once, outside the hot path.
    """
    n_in, n_out = w_t.shape
    # 256 fills the v6e/v7x MXU columns; keep 128 if 256 would leave a single
    # feature tile (megacore needs >= 2 tiles). On v5e 128 is MXU-native.
    tile_n = 256 if pl.cdiv(n_out, 256) >= 2 else 128
    n_out_pad = pl.cdiv(n_out, tile_n) * tile_n
    pad = n_out_pad - n_out

    def padf(a):
        return jnp.pad(a, ((0, 0), (0, pad))) if pad else a

    w_feed = padf(w_t).astype(feed_dtype)
    # Pack bias / gamma / beta into one (8, n_out_pad) f32 slab (rows 0-2 used)
    # so each grid step needs a single small DMA instead of three.
    params = jnp.zeros((8, n_out_pad), jnp.float32)
    params = params.at[0:1, :].set(padf(b.reshape(1, n_out)))
    params = params.at[1:2, :].set(padf(gamma.reshape(1, n_out)))
    params = params.at[2:3, :].set(padf(beta.reshape(1, n_out)))

    return dict(w=w_feed, params=params, n_in=n_in, n_out=n_out,
                n_out_pad=n_out_pad, tile_n=tile_n, feed_dtype=feed_dtype)


def linear_relu_block(x, prepared, *, out_dtype=jnp.float32,
                      force_k_tiling=False, tile_k=512):
    """Fused Linear -> LeakyReLU -> BatchNorm1d (training-mode stats).

    x: (N, n_in) f32 (N ideally a multiple of 16 for bf16 sublane packing).
    Returns (N, n_out) in out_dtype. Set feed_dtype=float32 in prepare_params
    if bit-closeness to a pure-f32 reference matters.
    """
    N, n_in = x.shape
    assert n_in == prepared["n_in"], (n_in, prepared["n_in"])
    tile_n = prepared["tile_n"]
    n_out = prepared["n_out"]
    n_out_pad = prepared["n_out_pad"]
    w = prepared["w"]
    params = prepared["params"]
    feed_dtype = prepared["feed_dtype"]
    feed_bytes = jnp.dtype(feed_dtype).itemsize

    x_feed = x.astype(feed_dtype)
    n_tiles = n_out_pad // tile_n

    cap = int(_vmem_capacity_bytes() * 0.8)   # headroom below physical VMEM

    # VMEM budget for the resident-x path:
    #   x (single buffer) + 2x W tile + 2x packed-params tile + 2x out tile
    #   + slack for the y/d f32 temporaries (vreg spill lands in VMEM).
    needed_resident = (N * n_in * feed_bytes
                       + 2 * n_in * tile_n * feed_bytes
                       + 2 * 8 * tile_n * 4
                       + 2 * N * tile_n * 4
                       + 3 * N * tile_n * 4)

    use_k_tiling = force_k_tiling or needed_resident > cap
    if use_k_tiling and n_in % 128 != 0:
        # TODO(synk): pad n_in (x cols / W rows) to a multiple of 128 so the
        # K-tiled path can be used for non-aligned n_in; fall back for now.
        use_k_tiling = False

    if not use_k_tiling:
        vmem_limit = min(max(needed_resident + (4 << 20), 32 << 20), cap)
        out = pl.pallas_call(
            _resident_kernel,
            out_shape=jax.ShapeDtypeStruct((N, n_out_pad), out_dtype),
            grid_spec=pltpu.PrefetchScalarGridSpec(
                num_scalar_prefetch=0,
                grid=(n_tiles,),
                in_specs=[
                    # x: whole array staged into VMEM once, single-buffered.
                    pl.BlockSpec(memory_space=pltpu.MemorySpace.VMEM),
                    pl.BlockSpec((n_in, tile_n), lambda j: (0, j)),
                    pl.BlockSpec((8, tile_n), lambda j: (0, j)),
                ],
                out_specs=pl.BlockSpec((N, tile_n), lambda j: (0, j)),
            ),
            compiler_params=pltpu.CompilerParams(
                dimension_semantics=("parallel",),
                vmem_limit_bytes=vmem_limit,
            ),
        )(x_feed, w, params)
    else:
        # K-tiled path for large N * n_in (e.g. v7x 64 MiB VMEM).
        tk = min(tile_k, n_in)
        tk -= tk % 128
        tk = max(tk, 128)
        while n_in % tk != 0:
            tk -= 128
        grid = (n_tiles, n_in // tk)

        needed_k = (2 * N * tk * feed_bytes          # x K-tile, double buffered
                    + 2 * tk * tile_n * feed_bytes   # W tile
                    + 2 * 8 * tile_n * 4             # packed params tile
                    + 2 * N * tile_n * 4             # out tile
                    + N * tile_n * 4                 # f32 accumulator scratch
                    + 2 * N * tile_n * 4)            # y/d temporaries
        vmem_limit = min(max(needed_k + (4 << 20), 32 << 20), cap)

        out = pl.pallas_call(
            _ktiled_kernel,
            out_shape=jax.ShapeDtypeStruct((N, n_out_pad), out_dtype),
            grid_spec=pltpu.PrefetchScalarGridSpec(
                num_scalar_prefetch=0,
                grid=grid,
                in_specs=[
                    pl.BlockSpec((N, tk), lambda j, k: (0, k)),
                    pl.BlockSpec((tk, tile_n), lambda j, k: (k, j)),
                    pl.BlockSpec((8, tile_n), lambda j, k: (0, j)),
                ],
                out_specs=pl.BlockSpec((N, tile_n), lambda j, k: (0, j)),
                scratch_shapes=[pltpu.VMEM((N, tile_n), jnp.float32)],
            ),
            compiler_params=pltpu.CompilerParams(
                dimension_semantics=("parallel", "arbitrary"),
                vmem_limit_bytes=vmem_limit,
            ),
        )(x_feed, w, params)

    return out[:, :n_out] if n_out_pad != n_out else out


# TODO(synk): BatchNorm1d running_mean/running_var updates (training-time side
# effect on module state) are not emitted; they do not affect the forward output.


if __name__ == "__main__":
    key = jax.random.PRNGKey(0)

    def make_inputs(k, N, n_in, n_out):
        kx, kw, kb, kg, kbeta = jax.random.split(k, 5)
        bound = 1.0 / float(n_in) ** 0.5   # PyTorch-default-like init scale
        x = jax.random.normal(kx, (N, n_in), dtype=jnp.float32)
        w_t = jax.random.uniform(kw, (n_in, n_out), minval=-bound,
                                 maxval=bound, dtype=jnp.float32)
        b = jax.random.uniform(kb, (1, n_out), minval=-bound, maxval=bound,
                               dtype=jnp.float32)
        gamma = 1.0 + 0.1 * jax.random.normal(kg, (1, n_out), dtype=jnp.float32)
        beta = 0.1 * jax.random.normal(kbeta, (1, n_out), dtype=jnp.float32)
        return x, w_t, b, gamma, beta

    def reference(x, w_t, b, gamma, beta):
        y = x @ w_t + b
        y = jnp.where(y >= 0.0, y, NEG_SLOPE * y)
        mean = y.mean(axis=0, keepdims=True)
        var = ((y - mean) ** 2).mean(axis=0, keepdims=True)
        return gamma * (y - mean) * jax.lax.rsqrt(var + EPS) + beta

    k1, k2 = jax.random.split(key)

    # Path 1: resident-x path at the module's natural small shapes
    # (LinearReLUBlock(n_in=32, n_out=64), batch of 8).
    x, w_t, b, gamma, beta = make_inputs(k1, 8, 32, 64)
    prep = prepare_params(w_t, b, gamma, beta)
    out = linear_relu_block(x, prep)
    jax.block_until_ready(out)
    assert out.shape == (8, 64), out.shape
    ref = reference(x, w_t, b, gamma, beta)
    err = float(jnp.max(jnp.abs(out - ref)))
    assert jnp.allclose(out, ref, atol=3e-2, rtol=3e-2), (
        f"resident path mismatch: max abs err = {err:.3e}")

    # Path 2: K-tiled reduction path, forced at small (but aligned) shapes so
    # the accumulator/epilogue code is exercised and verified as well.
    x2, w2, b2, g2, be2 = make_inputs(k2, 16, 256, 384)
    prep2 = prepare_params(w2, b2, g2, be2)
    out2 = linear_relu_block(x2, prep2, force_k_tiling=True, tile_k=128)
    jax.block_until_ready(out2)
    assert out2.shape == (16, 384), out2.shape
    ref2 = reference(x2, w2, b2, g2, be2)
    err2 = float(jnp.max(jnp.abs(out2 - ref2)))
    assert jnp.allclose(out2, ref2, atol=3e-2, rtol=3e-2), (
        f"K-tiled path mismatch: max abs err = {err2:.3e}")

    print("KERNEL_OK")
</pallas_src>

<mosaic_0001>
module attributes {stable_mosaic.version = 11 : i64} {
  func.func @_resident_kernel(%arg0: i32, %arg1: memref<8x32xbf16, #tpu.memory_space<vmem>>, %arg2: memref<32x128xbf16, #tpu.memory_space<vmem>>, %arg3: memref<8x128xf32, #tpu.memory_space<vmem>>, %arg4: memref<8x128xf32, #tpu.memory_space<vmem>>) attributes {dimension_semantics = [#tpu.dimension_semantics<parallel>], iteration_bounds = array<i64: 1>, scalar_prefetch = 0 : i64, scratch_operands = 0 : i64, tpu.core_type = #tpu.core_type<tc>, window_params = [{pipeline_mode = #tpu.pipeline_mode<synchronous>, transform_indices = @transform_0, window_bounds = array<i64: 8, 32>}, {transform_indices = @transform_1, window_bounds = array<i64: 32, 128>}, {transform_indices = @transform_2, window_bounds = array<i64: 8, 128>}, {transform_indices = @transform_3, window_bounds = array<i64: 8, 128>}]} {
    %c0 = arith.constant 0 : index
    %c0_0 = arith.constant 0 : index
    %0 = vector.load %arg1[%c0, %c0_0] : memref<8x32xbf16, #tpu.memory_space<vmem>>, vector<8x32xbf16>
    %c0_1 = arith.constant 0 : index
    %c0_2 = arith.constant 0 : index
    %1 = vector.load %arg2[%c0_1, %c0_2] : memref<32x128xbf16, #tpu.memory_space<vmem>>, vector<32x128xbf16>
    %cst = arith.constant dense<0.000000e+00> : vector<8x128xf32>
    %2 = tpu.matmul %0, %1, %cst {dimension_numbers = #tpu.dot_dimension_numbers<[1], [0], [0], [1], [0, 0, 1, 1], [], []>} : vector<8x32xbf16>, vector<32x128xbf16>, vector<8x128xf32> -> vector<8x128xf32>
    %c0_3 = arith.constant 0 : index
    %c0_4 = arith.constant 0 : index
    %3 = vector.load %arg3[%c0_3, %c0_4] : memref<8x128xf32, #tpu.memory_space<vmem>>, vector<1x128xf32>
    %4 = vector.broadcast %3 : vector<1x128xf32> to vector<8x128xf32>
    %5 = arith.addf %2, %4 : vector<8x128xf32>
    %cst_5 = arith.constant 0.000000e+00 : f32
    %6 = vector.broadcast %cst_5 : f32 to vector<8x128xf32>
    %7 = arith.cmpf oge, %5, %6 : vector<8x128xf32>
    %cst_6 = arith.constant 0.00999999977 : f32
    %8 = vector.broadcast %cst_6 : f32 to vector<8x128xf32>
    %9 = arith.mulf %8, %5 : vector<8x128xf32>
    %10 = arith.select %7, %5, %9 : vector<8x128xi1>, vector<8x128xf32>
    %cst_7 = arith.constant dense<0.000000e+00> : vector<128xf32>
    %11 = vector.multi_reduction <add>, %10, %cst_7 [0] : vector<8x128xf32> to vector<128xf32>
    %12 = vector.shape_cast %11 : vector<128xf32> to vector<1x128xf32>
    %cst_8 = arith.constant 1.250000e-01 : f32
    %13 = vector.broadcast %cst_8 : f32 to vector<1x128xf32>
    %14 = arith.mulf %12, %13 : vector<1x128xf32>
    %15 = vector.broadcast %14 : vector<1x128xf32> to vector<8x128xf32>
    %16 = arith.subf %10, %15 : vector<8x128xf32>
    %17 = arith.mulf %16, %16 : vector<8x128xf32>
    %cst_9 = arith.constant dense<0.000000e+00> : vector<128xf32>
    %18 = vector.multi_reduction <add>, %17, %cst_9 [0] : vector<8x128xf32> to vector<128xf32>
    %19 = vector.shape_cast %18 : vector<128xf32> to vector<1x128xf32>
    %cst_10 = arith.constant 1.250000e-01 : f32
    %20 = vector.broadcast %cst_10 : f32 to vector<1x128xf32>
    %21 = arith.mulf %19, %20 : vector<1x128xf32>
    %cst_11 = arith.constant 9.99999974E-6 : f32
    %22 = vector.broadcast %cst_11 : f32 to vector<1x128xf32>
    %23 = arith.addf %21, %22 : vector<1x128xf32>
    %24 = math.rsqrt %23 : vector<1x128xf32>
    %c1 = arith.constant 1 : index
    %c0_12 = arith.constant 0 : index
    %25 = vector.load %arg3[%c1, %c0_12] : memref<8x128xf32, #tpu.memory_space<vmem>>, vector<1x128xf32>
    %26 = arith.mulf %25, %24 : vector<1x128xf32>
    %27 = vector.broadcast %26 : vector<1x128xf32> to vector<8x128xf32>
    %28 = arith.mulf %16, %27 : vector<8x128xf32>
    %c2 = arith.constant 2 : index
    %c0_13 = arith.constant 0 : index
    %29 = vector.load %arg3[%c2, %c0_13] : memref<8x128xf32, #tpu.memory_space<vmem>>, vector<1x128xf32>
    %30 = vector.broadcast %29 : vector<1x128xf32> to vector<8x128xf32>
    %31 = arith.addf %28, %30 : vector<8x128xf32>
    %c0_14 = arith.constant 0 : index
    %c0_15 = arith.constant 0 : index
    %32 = vector.load %arg4[%c0_14, %c0_15] : memref<8x128xf32, #tpu.memory_space<vmem>>, vector<8x128xf32>
    tpu.vector_store %arg4[%c0_14, %c0_15], %31 {strides = array<i32>} : memref<8x128xf32, #tpu.memory_space<vmem>>, vector<8x128xf32>,
    return
  }
  func.func @transform_0(%arg0: i32) -> (i32, i32) {
    %c0_i32 = arith.constant 0 : i32
    %c0_i32_0 = arith.constant 0 : i32
    %c0_i32_1 = arith.constant 0 : i32
    return %c0_i32, %c0_i32_0 : i32, i32
  }
  func.func @transform_1(%arg0: i32) -> (i32, i32) {
    %c0_i32 = arith.constant 0 : i32
    %c0_i32_0 = arith.constant 0 : i32
    return %c0_i32, %arg0 : i32, i32
  }
  func.func @transform_2(%arg0: i32) -> (i32, i32) {
    %c0_i32 = arith.constant 0 : i32
    %c0_i32_0 = arith.constant 0 : i32
    return %c0_i32, %arg0 : i32, i32
  }
  func.func @transform_3(%arg0: i32) -> (i32, i32) {
    %c0_i32 = arith.constant 0 : i32
    %c0_i32_0 = arith.constant 0 : i32
    return %c0_i32, %arg0 : i32, i32
  }
}

</mosaic_0001>

<llo_original>
// kernel: tpu_custom_call.1
$region0: #{tpu_custom_call.1}
  #allocation0 [shape = 'u32[]', space=smem, size = 0x4, offset = 0x4, fixed_abs, tag = 'smem constant byte address 0x4 - core index']
  #allocation1 [shape = 'u32[72,128]{1,0:T(1,128)}', space=vmem, size = 0x9000, scoped, tag = 'internal scratch']
  %s0 = inlined_call_operand.hbm [shape: bf16[8,32], index: 0, kind: input, shape index: {}]
  %s1 = inlined_call_operand.hbm [shape: bf16[32,128], index: 1, kind: input, shape index: {}]
  %s2 = inlined_call_operand.hbm [shape: f32[8,128], index: 2, kind: input, shape index: {}]
  %s3 = inlined_call_operand.hbm [shape: f32[8,128], index: 3, kind: output, shape index: {}]
  %s4 = sld [smem:[#allocation0]]
  $region34: #{tpu_custom_call.1} parent=0
    _
  %s6 = ssub.s32 1, %s4
  %s7 = scalar_select 0, %s6, %s4
  $region1: #{tpu_custom_call.1} parent=0
    #allocation2 [shape = 'u8[2048]{0}', space=vmem, size = 0x800, scoped, tag = 'input window, operand 0, single buffered']
    #allocation3 [shape = 's32[1]{0}', space=sflag, size = 0x4, scoped, tag = 'scoped memory for tpu_custom_call.1']
    #allocation4 [shape = 's32[1]{0}', space=sflag, size = 0x4, scoped, tag = 'scoped memory for tpu_custom_call.1']
    #allocation5 [shape = 'u8[8192]{0}', space=vmem, size = 0x2000, scoped, tag = 'input window, operand 1, single buffered']
    #allocation6 [shape = 's32[1]{0}', space=sflag, size = 0x4, scoped, tag = 'scoped memory for tpu_custom_call.1']
    #allocation7 [shape = 'u8[4096]{0}', space=vmem, size = 0x1000, scoped, tag = 'input window, operand 2, single buffered']
    #allocation8 [shape = 'u8[4096]{0}', space=vmem, size = 0x1000, scoped, tag = 'output window, operand 0, single buffered']
    %8 = vsyncpa [#allocation3], 0
    %9 = vsyncpa [#allocation6], 0
    %10 = vsyncpa [#allocation4], 0
    // Predicated region
    $region2: #{tpu_custom_call.1} parent=1 // pred_check
      _
    $region3: #{tpu_custom_call.1} parent=1 // pred_check_branch
      %12 = sbr.rel (0) target = $region5
    $region4: #{tpu_custom_call.1} parent=1 // pred_region
      %14 = vsyncadd [#allocation3], 0
      %s16 = sshll.u32 %s0, 4
      %s17 = int_to_ptr.hbm [resolvable:$true] %s16
      %s18 = sshll.u32 [#allocation2], 4
      %s19 = int_to_ptr.vmem [resolvable:$true] %s18
      %21 = dma.hbm_to_vmem [thread:$0]  %s17, 64, %s19, [#allocation3]
    $region5: #{tpu_custom_call.1} parent=1 // pred_fallthru
      _
    // Predicated region
    $region6: #{tpu_custom_call.1} parent=1 // pred_check
      _
    $region7: #{tpu_custom_call.1} parent=1 // pred_check_branch
      %23 = sbr.rel (0) target = $region9
    $region8: #{tpu_custom_call.1} parent=1 // pred_region
      %25 = vsyncadd [#allocation6], 0
      %s26 = sshll.u32 %s1, 4
      %s27 = int_to_ptr.hbm [resolvable:$true] %s26
      %s28 = sshll.u32 [#allocation5], 4
      %s29 = int_to_ptr.vmem [resolvable:$true] %s28
      %34 = dma.hbm_to_vmem [thread:$0]  %s27, 256, %s29, [#allocation6], 64, 64, 4
    $region9: #{tpu_custom_call.1} parent=1 // pred_fallthru
      _
    // Predicated region
    $region10: #{tpu_custom_call.1} parent=1 // pred_check
      _
    $region11: #{tpu_custom_call.1} parent=1 // pred_check_branch
      %36 = sbr.rel (0) target = $region13
    $region12: #{tpu_custom_call.1} parent=1 // pred_region
      %38 = vsyncadd [#allocation6], 0
      %s40 = sshll.u32 %s2, 4
      %s41 = int_to_ptr.hbm [resolvable:$true] %s40
      %s42 = sshll.u32 [#allocation7], 4
      %s43 = int_to_ptr.vmem [resolvable:$true] %s42
      %45 = dma.hbm_to_vmem [thread:$0]  %s41, 128, %s43, [#allocation6]
    $region13: #{tpu_custom_call.1} parent=1 // pred_fallthru
      _
    // Predicated region
    $region14: #{tpu_custom_call.1} parent=1 // pred_check
      _
    $region15: #{tpu_custom_call.1} parent=1 // pred_check_branch
      %47 = sbr.rel (0) target = $region17
    $region16: #{tpu_custom_call.1} parent=1 // pred_region
      %49 = dma.done [#allocation3], 64
    $region17: #{tpu_custom_call.1} parent=1 // pred_fallthru
      _
    // Predicated region
    $region18: #{tpu_custom_call.1} parent=1 // pred_check
      _
    $region19: #{tpu_custom_call.1} parent=1 // pred_check_branch
      %51 = sbr.rel (0) target = $region21
    $region20: #{tpu_custom_call.1} parent=1 // pred_region
      %53 = dma.done [#allocation6], 256
    $region21: #{tpu_custom_call.1} parent=1 // pred_fallthru
      _
    // Predicated region
    $region22: #{tpu_custom_call.1} parent=1 // pred_check
      _
    $region23: #{tpu_custom_call.1} parent=1 // pred_check_branch
      %55 = sbr.rel (0) target = $region25
    $region24: #{tpu_custom_call.1} parent=1 // pred_region
      %57 = dma.done [#allocation6], 128
    $region25: #{tpu_custom_call.1} parent=1 // pred_fallthru
      _
    %v59 = vld [vmem:[#allocation2] sm:$0xf]
    %v60 = vld [vmem:[#allocation5] sm:$0xf]
    %v61 = vld [vmem:[#allocation5 + $0x4] sm:$0xf]
    %v62 = vld [vmem:[#allocation5 + $0x8] sm:$0xf]
    %v63 = vld [vmem:[#allocation5 + $0xc] sm:$0xf]
    %v64 = vld [vmem:[#allocation7] sm:$0x1]
    %v65 = vperm.slane %v64, 0
    %v70 = vunpack.c.l.b16 %v60
    %v71 = vunpack.c.l.b16 %v61
    %v72 = vunpack.c.l.b16 %v62
    %v73 = vunpack.c.l.b16 %v63
    %v74 = vpack.c.b16 %v71, %v70
    %v75 = vpack.c.b16 %v73, %v72
    %vm78 = vcmask 261120
    %v80 = vsel %vm78, %v59, 0
    %82 = vmatpush.bf16.msra.mxu0 0
    %83 = vmatpush.bf16.msra.mxu0 0
    %84 = vmatpush.bf16.msra.mxu0 0
    %85 = vmatpush.bf16.msra.mxu0 0
    %86 = vmatpush.bf16.msra.mxu0 0
    %87 = vmatpush.bf16.msra.mxu0 0
    %88 = vmatpush.bf16.msra.mxu0 %v75
    %89 = vmatpush.bf16.msra.mxu0 %v74
    %90 = vmatmul.bf16.gmra.mxu0 %v80
    %v91 = vpop.f32.mrf.mxu0
    %v92 = vadd.f32 %v65, %v91
    %v93 = vpop.f32.mrf.mxu0
    %94 = vdwg.mxu0
    %vm95 = vcmp.ge.f32.partialorder %v92, 0.0
    %v96 = vmul.f32 %v92, 0.01
    %v97 = vsel %vm95, %v92, %v96
    %v98 = vrot.slane %v97, 4
    %v99 = vadd.f32 %v97, %v98
    %v100 = vrot.slane %v99, 2
    %v101 = vadd.f32 %v99, %v100
    %v102 = vrot.slane %v101, 1
    %v103 = vadd.f32 %v101, %v102
    %v104 = vmul.f32 %v103, 0.125
    %v105 = vsub.f32 %v97, %v104
    %v106 = vmul.f32 %v105, %v105
    %v107 = vrot.slane %v106, 4
    %v108 = vadd.f32 %v106, %v107
    %v109 = vrot.slane %v108, 2
    %v110 = vadd.f32 %v108, %v109
    %v111 = vrot.slane %v110, 1
    %v112 = vadd.f32 %v110, %v111
    %v113 = vmul.f32 %v112, 0.125
    %v114 = vadd.f32 %v113, 1e-05
    %v115 = vrsqrt.pop %v114
    %v116 = vmul.f32 %v115, %v114
    %v117 = vmul.f32 %v116, %v115
    %v118 = vmul.f32 0.5, %v117
    %v119 = vsub.f32 1.5, %v118
    %v120 = vmul.f32 %v115, %v119
    %vm121 = vweird.f32 %v114
    %vm122 = vweird.f32 %v115
    %vm123 = vmor %vm121, %vm122
    %v124 = vsel %vm123, %v115, %v120
    %v125 = vld [vmem:[#allocation7 + $0x1] sm:$0x1]
    %v126 = vmul.f32 %v125, %v124
    %v127 = vperm.slane %v126, 0
    %v128 = vmul.f32 %v105, %v127
    %v129 = vld [vmem:[#allocation7 + $0x2] sm:$0x1]
    %v130 = vperm.slane %v129, 0
    %v131 = vadd.f32 %v128, %v130
    %132 = vst [vmem:[#allocation8] sm:$0xff] %v131
    // Predicated region
    $region26: #{tpu_custom_call.1} parent=1 // pred_check
      _
    $region27: #{tpu_custom_call.1} parent=1 // pred_check_branch
      %134 = sbr.rel (0) target = $region29
    $region28: #{tpu_custom_call.1} parent=1 // pred_region
      %136 = vsyncadd [#allocation4], 0
      %s138 = sshll.u32 [#allocation8], 4
      %s139 = int_to_ptr.vmem [resolvable:$true] %s138
      %s140 = sshll.u32 %s3, 4
      %s141 = int_to_ptr.hbm [resolvable:$true] %s140
      %143 = dma.vmem_to_hbm [thread:$0]  %s139, 128, %s141, [#allocation4]
    $region29: #{tpu_custom_call.1} parent=1 // pred_fallthru
      _
    // Predicated region
    $region30: #{tpu_custom_call.1} parent=1 // pred_check
      _
    $region31: #{tpu_custom_call.1} parent=1 // pred_check_branch
      %145 = sbr.rel (0) target = $region33
    $region32: #{tpu_custom_call.1} parent=1 // pred_region
      %147 = dma.done [#allocation4], 128
    $region33: #{tpu_custom_call.1} parent=1 // pred_fallthru
      _
    %148 = vsyncpa [#allocation3], 1
    %149 = vsyncpa [#allocation6], 1
    %150 = vsyncpa [#allocation4], 1

</llo_original>
